<compile_context>
chip_gen: v7x
topology: tpu7x:2x2x1
jax: 0.10.0
libtpu: 0.0.40
codegen_flags: <defaults>
</compile_context>

<pallas_src>
import jax
import jax.numpy as jnp
from jax.experimental import pallas as pl
from jax.experimental.pallas import tpu as pltpu


def _tlayer_kernel(x_ref, p1_ref, p2_ref, o_ref):
    # x_ref: (BB, T, L) tile of BB batch rows (in x's native dtype).
    x = x_ref[...]
    L = x.shape[-1]

    # Adaptive average pool over L: f32 accumulation, no full-tile widening.
    pooled = jnp.sum(x, axis=-1, dtype=jnp.float32) * (1.0 / L)   # (BB, T)

    # Temporal excitation MLP on the (otherwise idle) MXU:
    #   h = relu(pooled @ W1^T + b1)    -> (BB, H)
    #   s = sigmoid(h @ W2^T + b2)      -> (BB, T)
    p1 = p1_ref[...]                       # (T+1, H): rows [0:T]=W1^T, row T=b1
    p2 = p2_ref[...]                       # (H+1, T): rows [0:H]=W2^T, row H=b2
    w1t, b1 = p1[:-1, :], p1[-1:, :]
    w2t, b2 = p2[:-1, :], p2[-1:, :]

    h = jnp.dot(pooled, w1t, preferred_element_type=jnp.float32) + b1
    h = jnp.maximum(h, 0.0)                                        # (BB, H)
    s = jnp.dot(h, w2t, preferred_element_type=jnp.float32) + b2
    s = jax.nn.sigmoid(s)                                          # (BB, T)

    # Broadcast-multiply attention weights over the spatial axis in x's dtype.
    o_ref[...] = (x * s[:, :, None].astype(x.dtype)).astype(o_ref.dtype)


def tlayer_forward(
    x, w1, b1, w2, b2,
    *,
    block_bytes=6 * 1024 * 1024,
    vmem_limit_bytes=48 * 1024 * 1024,
):
    """x: (B, T, L); w1: (H, T); b1: (H,); w2: (T, H); b2: (T,)."""
    B, T, L = x.shape
    H = w1.shape[0]
    itemsize = jnp.dtype(x.dtype).itemsize

    # Fold params into two small operands: [W1^T; b1] (T+1, H), [W2^T; b2] (H+1, T).
    p1 = jnp.concatenate(
        [jnp.asarray(w1, jnp.float32).T, jnp.asarray(b1, jnp.float32).reshape(1, H)],
        axis=0)
    p2 = jnp.concatenate(
        [jnp.asarray(w2, jnp.float32).T, jnp.asarray(b2, jnp.float32).reshape(1, T)],
        axis=0)

    # Batch-block size: aim for ~block_bytes per (BB, T, L) buffer.
    row_bytes = T * L * itemsize
    BB = max(1, block_bytes // max(row_bytes, 1))
    if B >= 2:
        # Ensure the grid has >= 2 steps so both v7x TensorCores get work.
        BB = min(BB, pl.cdiv(B, 2))
    BB = min(BB, B)
    if BB >= 8:
        BB = (BB // 8) * 8          # sublane-align the (BB, T) intermediates
    grid = (pl.cdiv(B, BB),)

    # TODO(synk): if L is not a large multiple of 128, reshape in the wrapper
    # (e.g. process (B, T*L) slabs) so the trailing dim presented to the
    # kernel is lane-dense; the current path is optimal for L = k*128.
    cost = pl.CostEstimate(
        flops=3 * B * T * L,
        transcendentals=B * T,
        bytes_accessed=2 * B * T * L * itemsize,
    )

    return pl.pallas_call(
        _tlayer_kernel,
        out_shape=jax.ShapeDtypeStruct((B, T, L), x.dtype),
        grid_spec=pltpu.PrefetchScalarGridSpec(
            num_scalar_prefetch=0,
            grid=grid,
            in_specs=[
                pl.BlockSpec((BB, T, L), lambda i: (i, 0, 0)),
                # Tiny parameter operands: constant index_map -> fetched once.
                pl.BlockSpec((T + 1, H), lambda i: (0, 0)),
                pl.BlockSpec((H + 1, T), lambda i: (0, 0)),
            ],
            out_specs=pl.BlockSpec((BB, T, L), lambda i: (i, 0, 0)),
        ),
        compiler_params=pltpu.CompilerParams(
            dimension_semantics=("parallel",),
            vmem_limit_bytes=vmem_limit_bytes,
        ),
        cost_estimate=cost,
    )(x, p1, p2)


def tlayer_reference(x, w1, b1, w2, b2):
    """Pure-JAX reference mirroring the PyTorch forward."""
    pooled = jnp.mean(x, axis=-1)                       # (b, t)
    h = jnp.maximum(pooled @ w1.T + b1, 0.0)            # (b, H)
    s = jax.nn.sigmoid(h @ w2.T + b2)                   # (b, t)
    return x * s[:, :, None]


if __name__ == "__main__":
    # Small, module-consistent shapes: batch=2, timeWindows=16, length=128.
    B, T, L = 2, 16, 128
    REDUCTION = 4                      # timeWindows // reduction = 4
    H = T // REDUCTION

    key = jax.random.PRNGKey(0)
    kx, kw1, kb1, kw2, kb2 = jax.random.split(key, 5)

    x = jax.random.normal(kx, (B, T, L), dtype=jnp.float32)

    # Deterministic parameter init (Linear weight shapes follow nn.Linear).
    w1 = jax.random.normal(kw1, (H, T), dtype=jnp.float32) * 0.1   # Linear(T, H).weight
    b1 = jax.random.normal(kb1, (H,), dtype=jnp.float32) * 0.1
    w2 = jax.random.normal(kw2, (T, H), dtype=jnp.float32) * 0.1   # Linear(H, T).weight
    b2 = jax.random.normal(kb2, (T,), dtype=jnp.float32) * 0.1

    out = tlayer_forward(x, w1, b1, w2, b2)
    out = jax.block_until_ready(out)

    ref = tlayer_reference(x, w1, b1, w2, b2)
    assert out.shape == (B, T, L)
    assert jnp.allclose(out, ref, atol=1e-5, rtol=1e-5), "mismatch vs reference"

    print("KERNEL_OK")
</pallas_src>

<mosaic_0001>
module attributes {stable_mosaic.version = 11 : i64} {
  func.func @_tlayer_kernel(%arg0: i32, %arg1: memref<1x16x128xf32, #tpu.memory_space<vmem>>, %arg2: memref<17x4xf32, #tpu.memory_space<vmem>>, %arg3: memref<5x16xf32, #tpu.memory_space<vmem>>, %arg4: memref<1x16x128xf32, #tpu.memory_space<vmem>>) attributes {dimension_semantics = [#tpu.dimension_semantics<parallel>], iteration_bounds = array<i64: 2>, scalar_prefetch = 0 : i64, scratch_operands = 0 : i64, tpu.core_type = #tpu.core_type<tc>, window_params = [{transform_indices = @transform_0, window_bounds = array<i64: 1, 16, 128>}, {pipeline_mode = #tpu.pipeline_mode<synchronous>, transform_indices = @transform_1, window_bounds = array<i64: 17, 4>}, {pipeline_mode = #tpu.pipeline_mode<synchronous>, transform_indices = @transform_2, window_bounds = array<i64: 5, 16>}, {transform_indices = @transform_3, window_bounds = array<i64: 1, 16, 128>}]} {
    %c0 = arith.constant 0 : index
    %c0_0 = arith.constant 0 : index
    %c0_1 = arith.constant 0 : index
    %0 = vector.load %arg1[%c0, %c0_0, %c0_1] : memref<1x16x128xf32, #tpu.memory_space<vmem>>, vector<1x16x128xf32>
    %cst = arith.constant dense<0.000000e+00> : vector<1x16xf32>
    %1 = vector.multi_reduction <add>, %0, %cst [2] : vector<1x16x128xf32> to vector<1x16xf32>
    %cst_2 = arith.constant 7.812500e-03 : f32
    %2 = vector.broadcast %cst_2 : f32 to vector<1x16xf32>
    %3 = arith.mulf %1, %2 : vector<1x16xf32>
    %c0_3 = arith.constant 0 : index
    %c0_4 = arith.constant 0 : index
    %4 = vector.load %arg2[%c0_3, %c0_4] : memref<17x4xf32, #tpu.memory_space<vmem>>, vector<17x4xf32>
    %c0_5 = arith.constant 0 : index
    %c0_6 = arith.constant 0 : index
    %5 = vector.load %arg3[%c0_5, %c0_6] : memref<5x16xf32, #tpu.memory_space<vmem>>, vector<5x16xf32>
    %6 = vector.extract_strided_slice %4 {offsets = [0, 0], sizes = [16, 4], strides = [1, 1]} : vector<17x4xf32> to vector<16x4xf32>
    %7 = vector.extract_strided_slice %4 {offsets = [16, 0], sizes = [1, 4], strides = [1, 1]} : vector<17x4xf32> to vector<1x4xf32>
    %8 = vector.extract_strided_slice %5 {offsets = [0, 0], sizes = [4, 16], strides = [1, 1]} : vector<5x16xf32> to vector<4x16xf32>
    %9 = vector.extract_strided_slice %5 {offsets = [4, 0], sizes = [1, 16], strides = [1, 1]} : vector<5x16xf32> to vector<1x16xf32>
    %cst_7 = arith.constant dense<0.000000e+00> : vector<1x4xf32>
    %10 = tpu.matmul %3, %6, %cst_7 {dimension_numbers = #tpu.dot_dimension_numbers<[1], [0], [0], [1], [0, 0, 1, 1], [], []>} : vector<1x16xf32>, vector<16x4xf32>, vector<1x4xf32> -> vector<1x4xf32>
    %11 = arith.addf %10, %7 : vector<1x4xf32>
    %cst_8 = arith.constant 0.000000e+00 : f32
    %12 = vector.broadcast %cst_8 : f32 to vector<1x4xf32>
    %13 = arith.maximumf %11, %12 : vector<1x4xf32>
    %cst_9 = arith.constant dense<0.000000e+00> : vector<1x16xf32>
    %14 = tpu.matmul %13, %8, %cst_9 {dimension_numbers = #tpu.dot_dimension_numbers<[1], [0], [0], [1], [0, 0, 1, 1], [], []>} : vector<1x4xf32>, vector<4x16xf32>, vector<1x16xf32> -> vector<1x16xf32>
    %15 = arith.addf %14, %9 : vector<1x16xf32>
    %16 = arith.negf %15 : vector<1x16xf32>
    %17 = math.exp %16 : vector<1x16xf32>
    %cst_10 = arith.constant 1.000000e+00 : f32
    %18 = vector.broadcast %cst_10 : f32 to vector<1x16xf32>
    %19 = arith.addf %18, %17 : vector<1x16xf32>
    %20 = arith.divf %18, %19 : vector<1x16xf32>
    %21 = vector.shape_cast %20 : vector<1x16xf32> to vector<1x16x1xf32>
    %22 = vector.broadcast %21 : vector<1x16x1xf32> to vector<1x16x128xf32>
    %23 = arith.mulf %0, %22 : vector<1x16x128xf32>
    %c0_11 = arith.constant 0 : index
    %c0_12 = arith.constant 0 : index
    %c0_13 = arith.constant 0 : index
    %24 = vector.load %arg4[%c0_11, %c0_12, %c0_13] : memref<1x16x128xf32, #tpu.memory_space<vmem>>, vector<1x16x128xf32>
    tpu.vector_store %arg4[%c0_11, %c0_12, %c0_13], %23 {strides = array<i32>} : memref<1x16x128xf32, #tpu.memory_space<vmem>>, vector<1x16x128xf32>,
    return
  }
  func.func @transform_0(%arg0: i32) -> (i32, i32, i32) {
    %c0_i32 = arith.constant 0 : i32
    %c0_i32_0 = arith.constant 0 : i32
    %c0_i32_1 = arith.constant 0 : i32
    return %arg0, %c0_i32, %c0_i32_0 : i32, i32, i32
  }
  func.func @transform_1(%arg0: i32) -> (i32, i32) {
    %c0_i32 = arith.constant 0 : i32
    %c0_i32_0 = arith.constant 0 : i32
    %c0_i32_1 = arith.constant 0 : i32
    return %c0_i32, %c0_i32_0 : i32, i32
  }
  func.func @transform_2(%arg0: i32) -> (i32, i32) {
    %c0_i32 = arith.constant 0 : i32
    %c0_i32_0 = arith.constant 0 : i32
    %c0_i32_1 = arith.constant 0 : i32
    return %c0_i32, %c0_i32_0 : i32, i32
  }
  func.func @transform_3(%arg0: i32) -> (i32, i32, i32) {
    %c0_i32 = arith.constant 0 : i32
    %c0_i32_0 = arith.constant 0 : i32
    %c0_i32_1 = arith.constant 0 : i32
    return %arg0, %c0_i32, %c0_i32_0 : i32, i32, i32
  }
}

</mosaic_0001>

<llo_original>
// kernel: tpu_custom_call.1
$region0: #{tpu_custom_call.1}
  #allocation0 [shape = 'u32[]', space=smem, size = 0x4, offset = 0x4, fixed_abs, tag = 'smem constant byte address 0x4 - core index']
  #allocation1 [shape = 'u32[144,128]{1,0:T(1,128)}', space=vmem, size = 0x12000, scoped, tag = 'internal scratch']
  %s0 = inlined_call_operand.hbm [shape: f32[2,16,128], index: 0, kind: input, shape index: {}]
  %s1 = inlined_call_operand.vmem [shape: f32[17,4], index: 1, kind: input, shape index: {}]
  %s2 = inlined_call_operand.vmem [shape: f32[5,16], index: 2, kind: input, shape index: {}]
  %s3 = inlined_call_operand.hbm [shape: f32[2,16,128], index: 3, kind: output, shape index: {}]
  %s4 = sld [smem:[#allocation0]]
  $region49: #{tpu_custom_call.1} parent=0
    _
  %s6 = ssub.s32 1, %s4
  %s7 = scalar_select 0, %s6, %s4
  $region1: #{tpu_custom_call.1} parent=0
    #allocation2 [shape = 'u8[16384]{0}', space=vmem, size = 0x4000, scoped, tag = 'input window, operand 0']
    #allocation3 [shape = 's32[2]{0}', space=sflag, size = 0x8, scoped, tag = 'scoped memory for tpu_custom_call.1']
    #allocation4 [shape = 's32[2]{0}', space=sflag, size = 0x8, scoped, tag = 'scoped memory for tpu_custom_call.1']
    #allocation5 [shape = 'u8[16384]{0}', space=vmem, size = 0x4000, scoped, tag = 'output window, operand 0']
    %8 = vsyncpa [#allocation3], 0
    %s9 = scalar_lea.sflag [#allocation3], 1
    %10 = vsyncpa %s9, 0
    %11 = vsyncpa [#allocation4], 0
    %s12 = scalar_lea.sflag [#allocation4], 1
    %13 = vsyncpa %s12, 0
    loop: start=0, step=1, limit=4
    $region2: #{tpu_custom_call.1} parent=1 // loop_pre_header
      _
    $region3: #{tpu_custom_call.1} parent=1 // loop_header
      %s15 = sphi 0, %s19
      %p16 = scmp.ge.s32.totalorder %s15, 4
      %s25 = sphi 0, %s27
      %s28 = sphi 0, %s25
      %s29 = sphi 0, %s28
      %s45 = sphi 0, %s29
      %s49 = sphi 0, %s49
      %s51 = sphi 0, %s49
      %s52 = sphi 0, %s51
      %s66 = sphi 0, %s52
      %s70 = sphi 0, %s70
      %s72 = sphi 0, %s70
      %s73 = sphi 0, %s72
      %s87 = sphi 0, %s73
      %s93 = sphi 0, %s95
      %s96 = sphi 0, %s93
      %s97 = sphi 0, %s96
      %s113 = sphi 0, %s97
    $region4: #{tpu_custom_call.1} parent=1 // loop_header_branch
      %18 = sbr.rel (%p16) target = $region8
    $region5: #{tpu_custom_call.1} parent=1 // loop_body
      %s20 = ssub.s32 %s15, 1
      %s21 = ssub.s32 %s15, 2
      %s22 = sadd.s32 %s15, 1
      %s23 = ssub.s32 %s15, %s22
      %p24 = scmp.eq.s32.totalorder %s23, 0
      %s26 = sadd.s32 %s25, 1
      %s27 = scalar_select %p24, %s25, %s26
      %p30 = pneg %p24
      %p31 = scmp.eq.s32.totalorder %s15, 1
      %p32 = por %p30, %p31
      %p33 = scmp.ne.s32.totalorder %s25, %s28
      %p34 = scmp.eq.s32.totalorder %s15, 0
      %p35 = por %p33, %p34
      %p36 = scmp.ne.s32.totalorder %s25, %s28
      %p37 = scmp.eq.s32.totalorder %s20, 1
      %p38 = por %p36, %p37
      %p39 = scmp.ne.s32.totalorder %s28, %s29
      %p40 = scmp.eq.s32.totalorder %s20, 0
      %p41 = por %p39, %p40
      %p42 = scmp.ne.s32.totalorder %s28, %s29
      %p43 = scmp.eq.s32.totalorder %s21, 1
      %p44 = por %p42, %p43
      %p46 = scmp.ne.s32.totalorder %s29, %s45
      %p47 = scmp.eq.s32.totalorder %s21, 0
      %p48 = por %p46, %p47
      %s50 = sadd.s32 %s49, 1
      %p53 = scmp.eq.s32.totalorder %s15, 1
      %p54 = scmp.ne.s32.totalorder %s49, %s51
      %p55 = scmp.eq.s32.totalorder %s15, 0
      %p56 = por %p54, %p55
      %p57 = scmp.ne.s32.totalorder %s49, %s51
      %p58 = scmp.eq.s32.totalorder %s20, 1
      %p59 = por %p57, %p58
      %p60 = scmp.ne.s32.totalorder %s51, %s52
      %p61 = scmp.eq.s32.totalorder %s20, 0
      %p62 = por %p60, %p61
      %p63 = scmp.ne.s32.totalorder %s51, %s52
      %p64 = scmp.eq.s32.totalorder %s21, 1
      %p65 = por %p63, %p64
      %p67 = scmp.ne.s32.totalorder %s52, %s66
      %p68 = scmp.eq.s32.totalorder %s21, 0
      %p69 = por %p67, %p68
      %s71 = sadd.s32 %s70, 1
      %p74 = scmp.eq.s32.totalorder %s15, 1
      %p75 = scmp.ne.s32.totalorder %s70, %s72
      %p76 = scmp.eq.s32.totalorder %s15, 0
      %p77 = por %p75, %p76
      %p78 = scmp.ne.s32.totalorder %s70, %s72
      %p79 = scmp.eq.s32.totalorder %s20, 1
      %p80 = por %p78, %p79
      %p81 = scmp.ne.s32.totalorder %s72, %s73
      %p82 = scmp.eq.s32.totalorder %s20, 0
      %p83 = por %p81, %p82
      %p84 = scmp.ne.s32.totalorder %s72, %s73
      %p85 = scmp.eq.s32.totalorder %s21, 1
      %p86 = por %p84, %p85
      %p88 = scmp.ne.s32.totalorder %s73, %s87
      %p89 = scmp.eq.s32.totalorder %s21, 0
      %p90 = por %p88, %p89
      %s91 = ssub.s32 %s15, %s22
      %p92 = scmp.eq.s32.totalorder %s91, 0
      %s94 = sadd.s32 %s93, 1
      %s95 = scalar_select %p92, %s93, %s94
      %p98 = pneg %p92
      %p99 = scmp.eq.s32.totalorder %s15, 1
      %p100 = por %p98, %p99
      %p101 = scmp.ne.s32.totalorder %s93, %s96
      %p102 = scmp.eq.s32.totalorder %s15, 0
      %p103 = por %p101, %p102
      %p104 = scmp.ne.s32.totalorder %s93, %s96
      %p105 = scmp.eq.s32.totalorder %s20, 1
      %p106 = por %p104, %p105
      %p107 = scmp.ne.s32.totalorder %s96, %s97
      %p108 = scmp.eq.s32.totalorder %s20, 0
      %p109 = por %p107, %p108
      %p110 = scmp.ne.s32.totalorder %s96, %s97
      %p111 = scmp.eq.s32.totalorder %s21, 1
      %p112 = por %p110, %p111
      %p114 = scmp.ne.s32.totalorder %s97, %s113
      %p115 = scmp.eq.s32.totalorder %s21, 0
      %p116 = por %p114, %p115
      %p117 = scmp.le.s32.totalorder 1, %s15
      %p118 = scmp.lt.s32.totalorder %s15, 3
      %p119 = pnand %p117, %p118
      %p120 = pneg %p119
      // Predicated region
      $region9: #{tpu_custom_call.1} parent=5 // pred_check
        _
      $region10: #{tpu_custom_call.1} parent=5 // pred_check_branch
        %122 = sbr.rel (%p119) target = $region12
      $region11: #{tpu_custom_call.1} parent=5 // pred_region
        %s123 = ssub.s32 %s15, 1
        // Predicated region
        $region13: #{tpu_custom_call.1} parent=11 // pred_check
          %p124 = pneg %p62
        $region14: #{tpu_custom_call.1} parent=11 // pred_check_branch
          %126 = sbr.rel (%p124) target = $region16
        $region15: #{tpu_custom_call.1} parent=11 // pred_region
          _
        $region16: #{tpu_custom_call.1} parent=11 // pred_fallthru
          _
        // Predicated region
        $region17: #{tpu_custom_call.1} parent=11 // pred_check
          %p127 = pneg %p83
        $region18: #{tpu_custom_call.1} parent=11 // pred_check_branch
          %129 = sbr.rel (%p127) target = $region20
        $region19: #{tpu_custom_call.1} parent=11 // pred_region
          _
        $region20: #{tpu_custom_call.1} parent=11 // pred_fallthru
          _
      $region12: #{tpu_custom_call.1} parent=5 // pred_fallthru
        _
      %p130 = scmp.lt.s32.totalorder %s15, 2
      // Predicated region
      $region21: #{tpu_custom_call.1} parent=5 // pred_check
        %p131 = pneg %p130
      $region22: #{tpu_custom_call.1} parent=5 // pred_check_branch
        %133 = sbr.rel (%p131) target = $region24
      $region23: #{tpu_custom_call.1} parent=5 // pred_region
        // Predicated region
        $region25: #{tpu_custom_call.1} parent=23 // pred_check
          %p134 = pneg %p35
        $region26: #{tpu_custom_call.1} parent=23 // pred_check_branch
          %136 = sbr.rel (%p134) target = $region28
        $region27: #{tpu_custom_call.1} parent=23 // pred_region
          %s137 = sand.u32 %s25, 1
          %s138 = scalar_lea.sflag [#allocation3], %s137
          %s139 = sand.u32 %s25, 1
          %s140 = smul.addr %s139, 16
          %s141 = scalar_lea.vmem [#allocation2], %s140
          %s143 = ssub.s32 256, 256
          %144 = vsyncadd %s138, %s143
          %s145 = smul.addr %s15, 2
          %s146 = smul.addr %s145, 128
          %s147 = scalar_lea.hbm %s0, %s146
          %s148 = sshll.u32 %s141, 4
          %s149 = int_to_ptr.vmem [resolvable:$true] %s148
          %154 = dma.hbm_to_vmem [thread:$0]  %s147, 256, %s149, %s138, 128, 128, 8
        $region28: #{tpu_custom_call.1} parent=23 // pred_fallthru
          _
      $region24: #{tpu_custom_call.1} parent=5 // pred_fallthru
        _
      %p155 = scmp.le.s32.totalorder 1, %s15
      %p156 = scmp.lt.s32.totalorder %s15, 3
      %p157 = pnand %p155, %p156
      %p158 = pneg %p157
      // Predicated region
      $region29: #{tpu_custom_call.1} parent=5 // pred_check
        _
      $region30: #{tpu_custom_call.1} parent=5 // pred_check_branch
        %160 = sbr.rel (%p157) target = $region32
      $region31: #{tpu_custom_call.1} parent=5 // pred_region
        %s161 = ssub.s32 %s15, 1
        %s162 = sand.u32 %s28, 1
        %s163 = scalar_lea.sflag [#allocation3], %s162
        %s164 = sand.u32 %s28, 1
        %s165 = smul.addr %s164, 16
        %s166 = scalar_lea.vmem [#allocation2], %s165
        // Predicated region
        $region33: #{tpu_custom_call.1} parent=31 // pred_check
          %p167 = pneg %p41
        $region34: #{tpu_custom_call.1} parent=31 // pred_check_branch
          %169 = sbr.rel (%p167) target = $region36
        $region35: #{tpu_custom_call.1} parent=31 // pred_region
          %170 = dma.done %s163, 256
        $region36: #{tpu_custom_call.1} parent=31 // pred_fallthru
          _
        %s171 = sand.u32 %s28, 1
        %s172 = scalar_lea.sflag [#allocation3], %s171
        %s173 = sand.u32 %s28, 1
        %s174 = smul.addr %s173, 16
        %s175 = scalar_lea.vmem [#allocation2], %s174
        %p176 = pneg %p41
        %p177 = pneg %p38
        %p178 = pneg %p62
        %p179 = pneg %p59
        %p180 = pneg %p83
        %p181 = pneg %p80
        %p182 = pneg %p109
        %p183 = pneg %p106
        %s184 = sand.u32 %s96, 1
        %s185 = scalar_lea.sflag [#allocation4], %s184
        %s186 = sand.u32 %s96, 1
        %s187 = smul.addr %s186, 16
        %s188 = scalar_lea.vmem [#allocation5], %s187
        %v189 = vld [vmem:[%s166] sm:$0xff]
        %v190 = vld [vmem:[%s166 + $0x8] sm:$0xff]
        %191 = vadd.xlane.f32.xlu0 %v189
        %v192 = vpop.xlane.xlu0 %191
        %193 = vadd.xlane.f32.xlu0 %v190
        %v194 = vpop.xlane.xlu0 %193
        %v195 = vmul.f32 %v192, 0.0078125
        %v196 = vmul.f32 %v194, 0.0078125
        %v197 = vld [vmem:[%s1] sm:$0xff]
        %v198 = vld [vmem:[%s1 + $0x8] sm:$0xff]
        %v199 = vld [vmem:[%s1 + $0x10] sm:$0x1]
        %v200 = vld [vmem:[%s2] sm:$0x1f]
        %v203 = vlaneseq
        %v204 = vand.u32 %v203, 127
        %v205 = vlaneseq
        %v206 = vshrl.u32 %v205, 7
        %v207 = vsub.s32 %v204, %v206
        %v208 = vrot.slane %v195, %v207
        %v209 = vadd.s32 %v204, 4294967288
        %v210 = vlaneseq
        %v211 = vshrl.u32 %v210, 7
        %v212 = vsub.s32 %v209, %v211
        %v213 = vrot.slane %v196, %v212
        %vm214 = vcmask 130112
        %v215 = vsel %vm214, %v213, %v208
        %vm216 = vcmask 130048
        %v217 = vsel %vm216, %v215, 0
        %219 = vmatprep.subr.mxu0 0.0
        %220 = vmatpush1.msra.mxu0 %v197
        %221 = vmatprep.subr.mxu0 0.0
        %222 = vmatpush1.msra.mxu0 %v198
        %223 = vmatprep.subr.mxu0 0.0
        %224 = vmatpush1.msra.mxu0 0.0
        %225 = vmatprep.subr.mxu0 0.0
        %226 = vmatpush1.msra.mxu0 0.0
        %227 = vmatprep.subr.mxu0 0.0
        %228 = vmatpush1.msra.mxu0 0.0
        %229 = vmatprep.subr.mxu0 0.0
        %230 = vmatpush1.msra.mxu0 0.0
        %231 = vmatprep.subr.mxu0 0.0
        %232 = vmatpush1.msra.mxu0 0.0
        %233 = vmatprep.subr.mxu0 0.0
        %234 = vmatpush1.msra.mxu0 0.0
        %235 = vmatprep.subr.mxu0 0.0
        %236 = vmatpush1.msra.mxu0 0.0
        %237 = vmatprep.subr.mxu0 0.0
        %238 = vmatpush1.msra.mxu0 0.0
        %239 = vmatprep.subr.mxu0 0.0
        %240 = vmatpush1.msra.mxu0 0.0
        %241 = vmatprep.subr.mxu0 0.0
        %242 = vmatpush1.msra.mxu0 0.0
        %243 = vmatprep.subr.mxu0 0.0
        %244 = vmatpush1.msra.mxu0 0.0
        %245 = vmatprep.subr.mxu0 0.0
        %246 = vmatpush1.msra.mxu0 0.0
        %247 = vmatprep.subr.mxu0 0.0
        %248 = vmatpush1.msra.mxu0 0.0
        %249 = vmatprep.subr.mxu0 0.0
        %250 = vmatpush1.msra.mxu0 0.0
        %251 = vmatprep.subr.mxu0 0.0
        %252 = vmatpush1.msra.mxu0 0.0
        %253 = vmatprep.subr.mxu0 0.0
        %254 = vmatpush1.msra.mxu0 0.0
        %255 = vmatprep.subr.mxu0 0.0
        %256 = vmatpush1.msra.mxu0 0.0
        %257 = vmatprep.subr.mxu0 0.0
        %258 = vmatpush1.msra.mxu0 0.0
        %259 = vmatprep.subr.mxu0 0.0
        %260 = vmatpush1.msra.mxu0 0.0
        %261 = vmatprep.subr.mxu0 0.0
        %262 = vmatpush1.msra.mxu0 0.0
        %263 = vmatprep.subr.mxu0 0.0
        %264 = vmatpush1.msra.mxu0 0.0
        %265 = vmatprep.subr.mxu0 0.0
        %266 = vmatpush1.msra.mxu0 0.0
        %267 = vmatprep.subr.mxu0 0.0
        %268 = vmatpush1.msra.mxu0 0.0
        %269 = vmatprep.subr.mxu0 0.0
        %270 = vmatpush1.msra.mxu0 0.0
        %271 = vmatprep.subr.mxu0 0.0
        %272 = vmatpush1.msra.mxu0 0.0
        %273 = vmatprep.subr.mxu0 0.0
        %274 = vmatpush1.msra.mxu0 0.0
        %275 = vmatprep.subr.mxu0 0.0
        %276 = vmatpush1.msra.mxu0 0.0
        %277 = vmatprep.subr.mxu0 0.0
        %278 = vmatpush1.msra.mxu0 0.0
        %279 = vmatprep.subr.mxu0 0.0
        %280 = vmatpush1.msra.mxu0 0.0
        %281 = vmatprep.subr.mxu0 0.0
        %282 = vmatpush1.msra.mxu0 0.0
        %283 = vmatprep.mubr.f32.mxu0 0.0
        %284 = vmatmul.mubr.f32.gmra.mrb[0].mxu0 %v217
        %v285 = vpop.f32.mrb[0].mxu0
        %v286 = vadd.f32 %v199, %v285
        %v287 = vpop.f32.mrb[0].mxu0
        %288 = vdwg.mxu0
        %v289 = vmax.f32 %v286, 0.0
        %v291 = vrot.slane %v200, 4
        %vm293 = vcmask 31744
        %v295 = vsel %vm293, %v289, 0
        %vm297 = vcmask 1043456
        %v298 = vsel %vm297, %v200, 0
        %300 = vmatprep.subr.mxu0 0.0
        %301 = vmatpush1.msra.mxu0 %v298
        %302 = vmatprep.subr.mxu0 0.0
        %303 = vmatpush1.msra.mxu0 0.0
        %304 = vmatprep.subr.mxu0 0.0
        %305 = vmatpush1.msra.mxu0 0.0
        %306 = vmatprep.subr.mxu0 0.0
        %307 = vmatpush1.msra.mxu0 0.0
        %308 = vmatprep.subr.mxu0 0.0
        %309 = vmatpush1.msra.mxu0 0.0
        %310 = vmatprep.subr.mxu0 0.0
        %311 = vmatpush1.msra.mxu0 0.0
        %312 = vmatprep.subr.mxu0 0.0
        %313 = vmatpush1.msra.mxu0 0.0
        %314 = vmatprep.subr.mxu0 0.0
        %315 = vmatpush1.msra.mxu0 0.0
        %316 = vmatprep.subr.mxu0 0.0
        %317 = vmatpush1.msra.mxu0 0.0
        %318 = vmatprep.subr.mxu0 0.0
        %319 = vmatpush1.msra.mxu0 0.0
        %320 = vmatprep.subr.mxu0 0.0
        %321 = vmatpush1.msra.mxu0 0.0
        %322 = vmatprep.subr.mxu0 0.0
        %323 = vmatpush1.msra.mxu0 0.0
        %324 = vmatprep.subr.mxu0 0.0
        %325 = vmatpush1.msra.mxu0 0.0
        %326 = vmatprep.subr.mxu0 0.0
        %327 = vmatpush1.msra.mxu0 0.0
        %328 = vmatprep.subr.mxu0 0.0
        %329 = vmatpush1.msra.mxu0 0.0
        %330 = vmatprep.subr.mxu0 0.0
        %331 = vmatpush1.msra.mxu0 0.0
        %332 = vmatprep.subr.mxu0 0.0
        %333 = vmatpush1.msra.mxu0 0.0
        %334 = vmatprep.subr.mxu0 0.0
        %335 = vmatpush1.msra.mxu0 0.0
        %336 = vmatprep.subr.mxu0 0.0
        %337 = vmatpush1.msra.mxu0 0.0
        %338 = vmatprep.subr.mxu0 0.0
        %339 = vmatpush1.msra.mxu0 0.0
        %340 = vmatprep.subr.mxu0 0.0
        %341 = vmatpush1.msra.mxu0 0.0
        %342 = vmatprep.subr.mxu0 0.0
        %343 = vmatpush1.msra.mxu0 0.0
        %344 = vmatprep.subr.mxu0 0.0
        %345 = vmatpush1.msra.mxu0 0.0
        %346 = vmatprep.subr.mxu0 0.0
        %347 = vmatpush1.msra.mxu0 0.0
        %348 = vmatprep.subr.mxu0 0.0
        %349 = vmatpush1.msra.mxu0 0.0
        %350 = vmatprep.subr.mxu0 0.0
        %351 = vmatpush1.msra.mxu0 0.0
        %352 = vmatprep.subr.mxu0 0.0
        %353 = vmatpush1.msra.mxu0 0.0
        %354 = vmatprep.subr.mxu0 0.0
        %355 = vmatpush1.msra.mxu0 0.0
        %356 = vmatprep.subr.mxu0 0.0
        %357 = vmatpush1.msra.mxu0 0.0
        %358 = vmatprep.subr.mxu0 0.0
        %359 = vmatpush1.msra.mxu0 0.0
        %360 = vmatprep.subr.mxu0 0.0
        %361 = vmatpush1.msra.mxu0 0.0
        %362 = vmatprep.subr.mxu0 0.0
        %363 = vmatpush1.msra.mxu0 0.0
        %364 = vmatprep.mubr.f32.mxu0 0.0
        %365 = vmatmul.mubr.f32.gmra.mrb[0].mxu0 %v295
        %v366 = vpop.f32.mrb[0].mxu0
        %v367 = vadd.f32 %v291, %v366
        %v368 = vpop.f32.mrb[0].mxu0
        %369 = vdwg.mxu0
        %v370 = vxor.u32 %v367, 2147483648
        %v371 = vmul.f32 %v370, 1.442695
        %v372 = vpow.pop %v371
        %v373 = vadd.f32 %v372, 1.0
        %v374 = vrcp.pop %v373
        %v375 = vmul.f32 1.0, %v374
        %v376 = vlaneseq
        %v377 = vshrl.u32 %v376, 7
        %v378 = vsub.s32 0, %v377
        %v379 = vrot.slane %v375, %v378
        %381 = vbcast.lane.b32.xlu0 %v379, 256
        %v382 = vpop.permute.xlu0 %381
        %s384 = sor.u32 256, 8
        %385 = vbcast.lane.b32.xlu0 %v379, %s384
        %v386 = vpop.permute.xlu0 %385
        %v387 = vmul.f32 %v189, %v382
        %v388 = vmul.f32 %v190, %v386
        %389 = vst [vmem:[%s188] sm:$0xff] %v387
        %390 = vst [vmem:[%s188 + $0x8] sm:$0xff] %v388
        %s391 = sand.u32 %s96, 1
        %s392 = scalar_lea.sflag [#allocation4], %s391
        %s393 = sand.u32 %s96, 1
        %s394 = smul.addr %s393, 16
        %s395 = scalar_lea.vmem [#allocation5], %s394
        // Predicated region
        $region37: #{tpu_custom_call.1} parent=31 // pred_check
          %p396 = pneg %p106
        $region38: #{tpu_custom_call.1} parent=31 // pred_check_branch
          %398 = sbr.rel (%p396) target = $region40
        $region39: #{tpu_custom_call.1} parent=31 // pred_region
          %s400 = ssub.s32 256, 256
          %401 = vsyncadd %s392, %s400
          %s402 = smul.addr %s20, 2
          %s403 = smul.addr %s402, 128
          %s404 = scalar_lea.hbm %s3, %s403
          %s405 = sshll.u32 %s395, 4
          %s406 = int_to_ptr.vmem [resolvable:$true] %s405
          %411 = dma.vmem_to_hbm [thread:$0]  %s406, 256, %s404, %s392, 128, 128, 8
        $region40: #{tpu_custom_call.1} parent=31 // pred_fallthru
          _
      $region32: #{tpu_custom_call.1} parent=5 // pred_fallthru
        _
      %p412 = scmp.le.s32.totalorder 2, %s15
      // Predicated region
      $region41: #{tpu_custom_call.1} parent=5 // pred_check
        %p413 = pneg %p412
      $region42: #{tpu_custom_call.1} parent=5 // pred_check_branch
        %415 = sbr.rel (%p413) target = $region44
      $region43: #{tpu_custom_call.1} parent=5 // pred_region
        %s416 = ssub.s32 %s15, 2
        // Predicated region
        $region45: #{tpu_custom_call.1} parent=43 // pred_check
          %p417 = pneg %p112
        $region46: #{tpu_custom_call.1} parent=43 // pred_check_branch
          %419 = sbr.rel (%p417) target = $region48
        $region47: #{tpu_custom_call.1} parent=43 // pred_region
          %s420 = sand.u32 %s97, 1
          %s421 = scalar_lea.sflag [#allocation4], %s420
          %s422 = sand.u32 %s97, 1
          %s423 = smul.addr %s422, 16
          %s424 = scalar_lea.vmem [#allocation5], %s423
          %425 = dma.done %s421, 256
        $region48: #{tpu_custom_call.1} parent=43 // pred_fallthru
          _
      $region44: #{tpu_custom_call.1} parent=5 // pred_fallthru
        _
    $region6: #{tpu_custom_call.1} parent=1 // loop_footer
      %s19 = sadd.s32 1, %s15
    $region7: #{tpu_custom_call.1} parent=1 // loop_footer_branch
      %14 = sbr.rel target = $region3
    $region8: #{tpu_custom_call.1} parent=1 // loop_exit
      _
    %426 = vsyncpa [#allocation3], 1
    %s427 = scalar_lea.sflag [#allocation3], 1
    %428 = vsyncpa %s427, 1
    %429 = vsyncpa [#allocation4], 1
    %s430 = scalar_lea.sflag [#allocation4], 1
    %431 = vsyncpa %s430, 1

</llo_original>
